<compile_context>
chip_gen: v7x
topology: tpu7x:2x2x1
jax: 0.10.0
libtpu: 0.0.40
codegen_flags: <defaults>
</compile_context>

<pallas_src>
import numpy as np
import jax
import jax.numpy as jnp
from jax.experimental import pallas as pl
from jax.experimental.pallas import tpu as pltpu


def _round_up(n: int, m: int) -> int:
    return ((n + m - 1) // m) * m


# ----------------------------------------------------------------------------
# Parameter construction (mirrors ConfigurationDetector4.__init__ exactly),
# returned already in the kernel-friendly layout:
#   wt_pad: (F, Dp)  -- W transposed, feature-major, zero-padded to Dp=mult(128)
#   b_pad:  (1, Dp)  -- bias, zero-padded
#   d:      true output width (s * 3**p) to slice the padded result
# ----------------------------------------------------------------------------
def make_configuration_detector4_params(s: int, p: int):
    d = s * 3 ** p
    f = s + 2 * p
    w = np.zeros((d, f), dtype=np.float32)
    b = np.zeros((d,), dtype=np.float32)
    counter = 0
    for i in range(4 ** p):                     # _generate_v
        coefs = tuple(int(c) for c in f"{i:0{2 * p}b}")
        if any(coefs[j] == 1 and coefs[j + p] == 0 for j in range(p)):
            continue                            # invalid row -> skipped
        for z in range(s):                      # generate_v_z inner loop
            w[counter, s:] = coefs
            w[counter, z] = 1.0
            b[counter] = -float(sum(coefs))
            counter += 1
    assert counter == d

    dp = _round_up(d, 128)                      # lane-dense output width
    wt_pad = np.zeros((f, dp), dtype=np.float32)
    wt_pad[:, :d] = w.T                         # transpose hoisted out of forward
    b_pad = np.zeros((1, dp), dtype=np.float32)
    b_pad[0, :d] = b
    return jnp.asarray(wt_pad), jnp.asarray(b_pad), d, jnp.asarray(w), jnp.asarray(b)


# ----------------------------------------------------------------------------
# Pallas kernel: fused (x_tile @ W^T + b) followed by saturated ReLU clamp.
# x/W^T arrive in bf16 (halved DMA bytes); MXU accumulates in f32; bias add
# and clamp stay in f32 on the VPU.
# ----------------------------------------------------------------------------
def _cfg_det_kernel(x_ref, wt_ref, b_ref, o_ref):
    # x_ref:  (TB, F)  bf16 block in VMEM (batch tile)
    # wt_ref: (F, Dp)  bf16, VMEM-resident across all grid steps
    # b_ref:  (1, Dp)  f32,  VMEM-resident across all grid steps
    y = jnp.dot(x_ref[...], wt_ref[...], preferred_element_type=jnp.float32)
    y = y + b_ref[...]
    o_ref[...] = jnp.clip(y, 0.0, 1.0).astype(o_ref.dtype)   # saturated_relu


def configuration_detector4_forward(x, wt_pad, b_pad, d, *, tb_max=1024):
    """x: (B, F) float32; wt_pad: (F, Dp); b_pad: (1, Dp). Returns (B, d)."""
    B, F = x.shape
    Fw, Dp = wt_pad.shape
    assert F == Fw and Dp % 128 == 0

    # Batch tile: multiple of 8, capped for VMEM (2 bufs x-in + 2 bufs out
    # + resident W^T/bias stays far below the 32 MiB scoped default).
    TB = min(tb_max, _round_up(B, 8))
    Bp = _round_up(B, TB)
    if Bp != B:
        x = jnp.pad(x, ((0, Bp - B), (0, 0)))

    x_bf = x.astype(jnp.bfloat16)               # halve input DMA bytes
    wt_bf = wt_pad.astype(jnp.bfloat16)

    grid = (Bp // TB,)
    cost = pl.CostEstimate(
        flops=2 * Bp * F * Dp,
        transcendentals=0,
        bytes_accessed=2 * (Bp * F + F * Dp) + 4 * Dp + 4 * Bp * Dp,
    )

    out = pl.pallas_call(
        _cfg_det_kernel,
        out_shape=jax.ShapeDtypeStruct((Bp, Dp), jnp.float32),
        grid=grid,
        in_specs=[
            pl.BlockSpec((TB, F), lambda i: (i, 0)),   # batch-tiled input
            pl.BlockSpec((F, Dp), lambda i: (0, 0)),   # resident W^T
            pl.BlockSpec((1, Dp), lambda i: (0, 0)),   # resident bias
        ],
        out_specs=pl.BlockSpec((TB, Dp), lambda i: (i, 0)),  # lane-dense stores
        compiler_params=pltpu.CompilerParams(
            dimension_semantics=("parallel",),          # megacore sharding (v7x)
        ),
        cost_estimate=cost,
    )(x_bf, wt_bf, b_pad)

    return out[:B, :d]


# ----------------------------------------------------------------------------
# Demo / self-check
# ----------------------------------------------------------------------------
if __name__ == "__main__":
    s, p = 4, 2                   # d = s * 3^p = 36, in_features = s + 2p = 8
    batch = 8

    wt_pad, b_pad, d, w_ref, b_ref = make_configuration_detector4_params(s, p)

    key = jax.random.PRNGKey(0)
    x = jax.random.normal(key, (batch, s + 2 * p), dtype=jnp.float32)

    out = configuration_detector4_forward(x, wt_pad, b_pad, d)
    out = jax.block_until_ready(out)

    # Pure-JAX reference (same semantics as the PyTorch forward).
    ref = jnp.clip(x @ w_ref.T + b_ref, 0.0, 1.0)
    assert out.shape == (batch, d)
    # bf16 inputs on the MXU -> allow ~2^-8 relative input rounding.
    np.testing.assert_allclose(np.asarray(out), np.asarray(ref),
                               rtol=2e-2, atol=2e-2)

    print("KERNEL_OK")
</pallas_src>

<mosaic_0001>
module attributes {stable_mosaic.version = 11 : i64} {
  func.func @_cfg_det_kernel(%arg0: i32, %arg1: memref<8x8xbf16, #tpu.memory_space<vmem>>, %arg2: memref<8x128xbf16, #tpu.memory_space<vmem>>, %arg3: memref<1x128xf32, #tpu.memory_space<vmem>>, %arg4: memref<8x128xf32, #tpu.memory_space<vmem>>) attributes {dimension_semantics = [#tpu.dimension_semantics<parallel>], iteration_bounds = array<i64: 1>, scalar_prefetch = 0 : i64, scratch_operands = 0 : i64, tpu.core_type = #tpu.core_type<tc>, window_params = [{transform_indices = @transform_0, window_bounds = array<i64: 8, 8>}, {pipeline_mode = #tpu.pipeline_mode<synchronous>, transform_indices = @transform_1, window_bounds = array<i64: 8, 128>}, {pipeline_mode = #tpu.pipeline_mode<synchronous>, transform_indices = @transform_2, window_bounds = array<i64: 1, 128>}, {transform_indices = @transform_3, window_bounds = array<i64: 8, 128>}]} {
    %c0 = arith.constant 0 : index
    %c0_0 = arith.constant 0 : index
    %0 = vector.load %arg1[%c0, %c0_0] : memref<8x8xbf16, #tpu.memory_space<vmem>>, vector<8x8xbf16>
    %c0_1 = arith.constant 0 : index
    %c0_2 = arith.constant 0 : index
    %1 = vector.load %arg2[%c0_1, %c0_2] : memref<8x128xbf16, #tpu.memory_space<vmem>>, vector<8x128xbf16>
    %cst = arith.constant dense<0.000000e+00> : vector<8x128xf32>
    %2 = tpu.matmul %0, %1, %cst {dimension_numbers = #tpu.dot_dimension_numbers<[1], [0], [0], [1], [0, 0, 1, 1], [], []>} : vector<8x8xbf16>, vector<8x128xbf16>, vector<8x128xf32> -> vector<8x128xf32>
    %c0_3 = arith.constant 0 : index
    %c0_4 = arith.constant 0 : index
    %3 = vector.load %arg3[%c0_3, %c0_4] : memref<1x128xf32, #tpu.memory_space<vmem>>, vector<1x128xf32>
    %4 = vector.broadcast %3 : vector<1x128xf32> to vector<8x128xf32>
    %5 = arith.addf %2, %4 : vector<8x128xf32>
    %cst_5 = arith.constant 0.000000e+00 : f32
    %cst_6 = arith.constant 1.000000e+00 : f32
    %6 = vector.broadcast %cst_5 : f32 to vector<8x128xf32>
    %7 = arith.maximumf %6, %5 : vector<8x128xf32>
    %8 = vector.broadcast %cst_6 : f32 to vector<8x128xf32>
    %9 = arith.minimumf %8, %7 : vector<8x128xf32>
    %c0_7 = arith.constant 0 : index
    %c0_8 = arith.constant 0 : index
    %10 = vector.load %arg4[%c0_7, %c0_8] : memref<8x128xf32, #tpu.memory_space<vmem>>, vector<8x128xf32>
    tpu.vector_store %arg4[%c0_7, %c0_8], %9 {strides = array<i32>} : memref<8x128xf32, #tpu.memory_space<vmem>>, vector<8x128xf32>,
    return
  }
  func.func @transform_0(%arg0: i32) -> (i32, i32) {
    %c0_i32 = arith.constant 0 : i32
    %c0_i32_0 = arith.constant 0 : i32
    return %arg0, %c0_i32 : i32, i32
  }
  func.func @transform_1(%arg0: i32) -> (i32, i32) {
    %c0_i32 = arith.constant 0 : i32
    %c0_i32_0 = arith.constant 0 : i32
    %c0_i32_1 = arith.constant 0 : i32
    return %c0_i32, %c0_i32_0 : i32, i32
  }
  func.func @transform_2(%arg0: i32) -> (i32, i32) {
    %c0_i32 = arith.constant 0 : i32
    %c0_i32_0 = arith.constant 0 : i32
    %c0_i32_1 = arith.constant 0 : i32
    return %c0_i32, %c0_i32_0 : i32, i32
  }
  func.func @transform_3(%arg0: i32) -> (i32, i32) {
    %c0_i32 = arith.constant 0 : i32
    %c0_i32_0 = arith.constant 0 : i32
    return %arg0, %c0_i32 : i32, i32
  }
}

</mosaic_0001>

<llo_original>
// kernel: tpu_custom_call.1
$region0: #{tpu_custom_call.1}
  #allocation0 [shape = 'u32[]', space=smem, size = 0x4, offset = 0x4, fixed_abs, tag = 'smem constant byte address 0x4 - core index']
  #allocation1 [shape = 'u32[144,128]{1,0:T(1,128)}', space=vmem, size = 0x12000, scoped, tag = 'internal scratch']
  %s0 = inlined_call_operand.hbm [shape: bf16[8,8], index: 0, kind: input, shape index: {}]
  %s1 = inlined_call_operand.hbm [shape: bf16[8,128], index: 1, kind: input, shape index: {}]
  %s2 = inlined_call_operand.vmem [shape: f32[1,128], index: 2, kind: input, shape index: {}]
  %s3 = inlined_call_operand.hbm [shape: f32[8,128], index: 3, kind: output, shape index: {}]
  %s4 = sld [smem:[#allocation0]]
  $region30: #{tpu_custom_call.1} parent=0
    _
  %s6 = ssub.s32 1, %s4
  %s7 = scalar_select 0, %s6, %s4
  $region1: #{tpu_custom_call.1} parent=0
    #allocation2 [shape = 'u8[2048]{0}', space=vmem, size = 0x800, scoped, tag = 'input window, operand 0, single buffered']
    #allocation3 [shape = 's32[1]{0}', space=sflag, size = 0x4, scoped, tag = 'scoped memory for tpu_custom_call.1']
    #allocation4 [shape = 's32[1]{0}', space=sflag, size = 0x4, scoped, tag = 'scoped memory for tpu_custom_call.1']
    #allocation5 [shape = 'u8[2048]{0}', space=vmem, size = 0x800, scoped, tag = 'input window, operand 1, single buffered']
    #allocation6 [shape = 's32[1]{0}', space=sflag, size = 0x4, scoped, tag = 'scoped memory for tpu_custom_call.1']
    #allocation7 [shape = 'u8[4096]{0}', space=vmem, size = 0x1000, scoped, tag = 'output window, operand 0, single buffered']
    %8 = vsyncpa [#allocation3], 0
    %9 = vsyncpa [#allocation6], 0
    %10 = vsyncpa [#allocation4], 0
    // Predicated region
    $region2: #{tpu_custom_call.1} parent=1 // pred_check
      _
    $region3: #{tpu_custom_call.1} parent=1 // pred_check_branch
      %12 = sbr.rel (0) target = $region5
    $region4: #{tpu_custom_call.1} parent=1 // pred_region
      %s14 = ssub.s32 64, 64
      %15 = vsyncadd [#allocation3], %s14
      %s17 = sshll.u32 [#allocation2], 4
      %s18 = int_to_ptr.vmem [resolvable:$true] %s17
      %20 = dma.hbm_to_vmem [thread:$0]  %s0, 64, %s18, [#allocation3]
    $region5: #{tpu_custom_call.1} parent=1 // pred_fallthru
      _
    // Predicated region
    $region6: #{tpu_custom_call.1} parent=1 // pred_check
      _
    $region7: #{tpu_custom_call.1} parent=1 // pred_check_branch
      %22 = sbr.rel (0) target = $region9
    $region8: #{tpu_custom_call.1} parent=1 // pred_region
      %s24 = ssub.s32 64, 64
      %25 = vsyncadd [#allocation6], %s24
      %s27 = sshll.u32 [#allocation5], 4
      %s28 = int_to_ptr.vmem [resolvable:$true] %s27
      %30 = dma.hbm_to_vmem [thread:$0]  %s1, 64, %s28, [#allocation6]
    $region9: #{tpu_custom_call.1} parent=1 // pred_fallthru
      _
    // Predicated region
    $region10: #{tpu_custom_call.1} parent=1 // pred_check
      _
    $region11: #{tpu_custom_call.1} parent=1 // pred_check_branch
      %32 = sbr.rel (0) target = $region13
    $region12: #{tpu_custom_call.1} parent=1 // pred_region
      _
    $region13: #{tpu_custom_call.1} parent=1 // pred_fallthru
      _
    // Predicated region
    $region14: #{tpu_custom_call.1} parent=1 // pred_check
      _
    $region15: #{tpu_custom_call.1} parent=1 // pred_check_branch
      %34 = sbr.rel (0) target = $region17
    $region16: #{tpu_custom_call.1} parent=1 // pred_region
      %35 = dma.done [#allocation3], 64
    $region17: #{tpu_custom_call.1} parent=1 // pred_fallthru
      _
    // Predicated region
    $region18: #{tpu_custom_call.1} parent=1 // pred_check
      _
    $region19: #{tpu_custom_call.1} parent=1 // pred_check_branch
      %37 = sbr.rel (0) target = $region21
    $region20: #{tpu_custom_call.1} parent=1 // pred_region
      %38 = dma.done [#allocation6], 64
    $region21: #{tpu_custom_call.1} parent=1 // pred_fallthru
      _
    %v40 = vld [vmem:[#allocation2] sm:$0xf]
    %v41 = vld [vmem:[#allocation5] sm:$0xf]
    %v42 = vld [vmem:[%s2] sm:$0x1]
    %v44 = vlaneseq
    %v45 = vshrl.u32 %v44, 7
    %v46 = vsub.s32 0, %v45
    %v47 = vrot.slane %v42, %v46
    %vm49 = vcmask 64512
    %v51 = vsel %vm49, %v40, 0
    %vm53 = vcmask 1043456
    %v55 = vsel %vm53, %v41, 0
    %57 = vmatprep.subr.bf16.mxu0 0
    %58 = vmatpush1.bf16.msra.mxu0 %v55
    %59 = vmatprep.subr.bf16.mxu0 0
    %60 = vmatpush1.bf16.msra.mxu0 0
    %61 = vmatprep.subr.bf16.mxu0 0
    %62 = vmatpush1.bf16.msra.mxu0 0
    %63 = vmatprep.subr.bf16.mxu0 0
    %64 = vmatpush1.bf16.msra.mxu0 0
    %65 = vmatprep.subr.bf16.mxu0 0
    %66 = vmatpush1.bf16.msra.mxu0 0
    %67 = vmatprep.subr.bf16.mxu0 0
    %68 = vmatpush1.bf16.msra.mxu0 0
    %69 = vmatprep.subr.bf16.mxu0 0
    %70 = vmatpush1.bf16.msra.mxu0 0
    %71 = vmatprep.subr.bf16.mxu0 0
    %72 = vmatpush1.bf16.msra.mxu0 0
    %73 = vmatprep.subr.bf16.mxu0 0
    %74 = vmatpush1.bf16.msra.mxu0 0
    %75 = vmatprep.subr.bf16.mxu0 0
    %76 = vmatpush1.bf16.msra.mxu0 0
    %77 = vmatprep.subr.bf16.mxu0 0
    %78 = vmatpush1.bf16.msra.mxu0 0
    %79 = vmatprep.subr.bf16.mxu0 0
    %80 = vmatpush1.bf16.msra.mxu0 0
    %81 = vmatprep.subr.bf16.mxu0 0
    %82 = vmatpush1.bf16.msra.mxu0 0
    %83 = vmatprep.subr.bf16.mxu0 0
    %84 = vmatpush1.bf16.msra.mxu0 0
    %85 = vmatprep.subr.bf16.mxu0 0
    %86 = vmatpush1.bf16.msra.mxu0 0
    %87 = vmatprep.subr.bf16.mxu0 0
    %88 = vmatpush1.bf16.msra.mxu0 0
    %89 = vmatprep.mubr.bf16.mxu0 0
    %90 = vmatmul.mubr.bf16.gmra.mrb[0].mxu0 %v51
    %v91 = vpop.f32.mrb[0].mxu0
    %v92 = vadd.f32 %v47, %v91
    %v93 = vpop.f32.mrb[0].mxu0
    %v94 = vpop.f32.mrb[0].mxu0
    %v95 = vpop.f32.mrb[0].mxu0
    %96 = vdwg.mxu0
    %v97 = vmax.f32 %v92, 0.0
    %v98 = vmin.f32 %v97, 1.0
    %99 = vst [vmem:[#allocation7] sm:$0xff] %v98
    // Predicated region
    $region22: #{tpu_custom_call.1} parent=1 // pred_check
      _
    $region23: #{tpu_custom_call.1} parent=1 // pred_check_branch
      %101 = sbr.rel (0) target = $region25
    $region24: #{tpu_custom_call.1} parent=1 // pred_region
      %s103 = ssub.s32 128, 128
      %104 = vsyncadd [#allocation4], %s103
      %s106 = sshll.u32 [#allocation7], 4
      %s107 = int_to_ptr.vmem [resolvable:$true] %s106
      %109 = dma.vmem_to_hbm [thread:$0]  %s107, 128, %s3, [#allocation4]
    $region25: #{tpu_custom_call.1} parent=1 // pred_fallthru
      _
    // Predicated region
    $region26: #{tpu_custom_call.1} parent=1 // pred_check
      _
    $region27: #{tpu_custom_call.1} parent=1 // pred_check_branch
      %111 = sbr.rel (0) target = $region29
    $region28: #{tpu_custom_call.1} parent=1 // pred_region
      %112 = dma.done [#allocation4], 128
    $region29: #{tpu_custom_call.1} parent=1 // pred_fallthru
      _
    %113 = vsyncpa [#allocation3], 1
    %114 = vsyncpa [#allocation6], 1
    %115 = vsyncpa [#allocation4], 1

</llo_original>
